<compile_context>
chip_gen: v6e
topology: v6e:2x2x1
jax: 0.10.0
libtpu: 0.0.40
codegen_flags: <defaults>
</compile_context>

<pallas_src>
import jax
import jax.numpy as jnp
from jax import lax
from jax.experimental import pallas as pl
from jax.experimental.pallas import tpu as pltpu

KS = 3          # kernel_size
PAD = KS // 2   # Conv2d padding (dilation == 1)
EPS = 1e-5      # BatchNorm2d default eps


# --------------------------------------------------------------------------------------------
# Pass 1: pooling + 3x3 conv (single bf16 MXU matmul, f32 accumulate) + BN partial statistics.
#   xt_ref    : [4, MB, Kp]   bf16   (4 pool-window taps, ky/kx/ci folded along lanes)
#   wb_ref    : [Kp, WC]      bf16   (banded / Toeplitz-packed weights, WC = Wo*Cp = 128)
#   sel_ref   : [WC, Cp]      f32    (block-identity selector: lane (w, co) -> channel co)
#   conv_ref  : [MB, WC]      bf16   (lane-dense conv activations)
#   stats_ref : [1, 2, Cp]    f32    (per-tile channel sum / sum-of-squares)
# --------------------------------------------------------------------------------------------
def pool_conv_stats_kernel(xt_ref, wb_ref, sel_ref, conv_ref, stats_ref):
    # max_pool2d(2,2, ceil_mode=True): elementwise max over the four taps.  Halo positions have
    # all four taps == 0 (conv zero padding pre-baked); ceil-mode tails carry -inf taps.
    pooled = jnp.maximum(jnp.maximum(xt_ref[0], xt_ref[1]),
                         jnp.maximum(xt_ref[2], xt_ref[3]))                 # [MB, Kp] bf16

    # 3x3 conv: one MXU push, K = KS*Wp*Cin (padded to 128), M = NB*Ho, N = Wo*Cp = 128.
    acc = jnp.dot(pooled, wb_ref[...],
                  preferred_element_type=jnp.float32)                       # [MB, WC] f32

    conv_ref[...] = acc.astype(conv_ref.dtype)                              # lane-dense bf16 store

    # One-pass BN partials for this tile: per-channel sum and sum of squares, computed from the
    # f32 accumulator.  Selector matmuls collapse the Wo lane groups (rides in MXU slack).
    ps = jnp.dot(acc, sel_ref[...], preferred_element_type=jnp.float32)         # [MB, Cp]
    pss = jnp.dot(acc * acc, sel_ref[...], preferred_element_type=jnp.float32)  # [MB, Cp]
    stats_ref[0, 0:1, :] = jnp.sum(ps, axis=0, keepdims=True)
    stats_ref[0, 1:2, :] = jnp.sum(pss, axis=0, keepdims=True)


# --------------------------------------------------------------------------------------------
# Pass 3: y = conv * scale_l + shift_l ; ReLU.   Pure VPU FMA, memory-bound.
#   conv_ref : [MB, WC] bf16   scale_ref/shift_ref : [1, WC] f32   out_ref : [MB, WC] f32
# --------------------------------------------------------------------------------------------
def bn_relu_kernel(conv_ref, scale_ref, shift_ref, out_ref):
    y = conv_ref[...].astype(jnp.float32) * scale_ref[...] + shift_ref[...]
    out_ref[...] = jnp.maximum(y, 0.0)


def down_conv_bn_relu(x_nchw, w_oihw, gamma, beta):
    """NCHW in -> NCHW out; all arithmetic on the data happens inside the Pallas kernels."""
    N, Cin, H, W = x_nchw.shape
    Cout = w_oihw.shape[0]
    Ho, Wo = -(-H // 2), -(-W // 2)              # ceil_mode=True pooled size
    Hp, Wp = Ho + 2 * PAD, Wo + 2 * PAD          # conv-padded pooled grid

    # Lane padding: pad Cout so the lane dim Wo*Cp is a multiple of 128 (unmasked stores).
    Cp = Cout
    while (Wo * Cp) % 128 != 0:
        Cp += 1
    WC = Wo * Cp                                  # = 128 for the test shapes

    # Contraction depth (ky, kx-band, ci folded), padded to a 128 multiple for the MXU.
    K = KS * Wp * Cin
    Kp = -(-K // 128) * 128

    # Batch folding: target matmul M ~= 128 rows per grid step (review: 128 on v5e, ~256 on
    # v6e/v7x; also keep enough grid steps per TC at production N — impossible at N=2).
    NB = max(1, min(N, max(1, 128 // Ho)))
    Npad = -(-N // NB) * NB                       # zero-padded batches contribute 0 to BN sums
    G = Npad // NB
    MB = NB * Ho

    # ---- layout plumbing only (transpose / pad / reshape) ------------------------------------
    xb = jnp.transpose(x_nchw, (0, 2, 3, 1)).astype(jnp.bfloat16)        # NHWC bf16 (half DMA)
    if Npad > N:
        xb = jnp.pad(xb, ((0, Npad - N), (0, 0), (0, 0), (0, 0)))
    xb = jnp.pad(xb, ((0, 0), (0, 2 * Ho - H), (0, 2 * Wo - W), (0, 0)),
                 constant_values=-jnp.inf)                               # ceil_mode tail
    taps = xb.reshape(Npad, Ho, 2, Wo, 2, Cin).transpose(0, 2, 4, 1, 3, 5)
    taps = taps.reshape(Npad, 4, Ho, Wo, Cin)                            # [N,4,Ho,Wo,Cin]
    # conv zero-halo pre-baked on the pooled grid (max over four zero taps == 0)
    taps = jnp.pad(taps, ((0, 0), (0, 0), (PAD, PAD), (PAD, PAD), (0, 0)))  # [N,4,Hp,Wp,Cin]
    # ky-fold: pack the KS ky-shifted row windows along lanes -> contraction dim K
    xt = jnp.stack([taps[:, :, ky:ky + Ho] for ky in range(KS)], axis=3)    # [N,4,Ho,KS,Wp,Cin]
    xt = xt.reshape(Npad, 4, Ho, K)
    xt = jnp.pad(xt, ((0, 0), (0, 0), (0, 0), (0, Kp - K)))                 # K pad (zeros)
    xt = jnp.transpose(xt, (1, 0, 2, 3)).reshape(4, Npad * Ho, Kp)          # [4, Npad*Ho, Kp]

    # ---- weight pre-packing: banded (Toeplitz) matrix folding ky, kx and W into the K / N dims.
    # wb[ky*Wp*Cin + wi*Cin + ci, w*Cp + co] = w[co, ci, ky, kx] if wi == w + kx else 0.
    w_hwio = jnp.transpose(w_oihw, (2, 3, 1, 0)).astype(jnp.float32)     # [KS,KS,Cin,Cout]
    band = (jnp.arange(Wp)[None, :, None] ==
            (jnp.arange(Wo)[None, None, :] + jnp.arange(KS)[:, None, None])
            ).astype(jnp.float32)                                        # [KS, Wp, Wo]
    wb = jnp.einsum('xiw,yxcd->yicwd', band, w_hwio)                     # [KS,Wp,Cin,Wo,Cout]
    wb = jnp.pad(wb, ((0, 0), (0, 0), (0, 0), (0, 0), (0, Cp - Cout)))   # pad channels (zeros)
    wb = wb.reshape(K, WC)
    wb = jnp.pad(wb, ((0, Kp - K), (0, 0))).astype(jnp.bfloat16)         # [Kp, WC] bf16

    # Block-identity selector mapping lane (w, co) -> channel co, for the BN partial sums.
    sel = jnp.tile(jnp.eye(Cp, dtype=jnp.float32), (Wo, 1))              # [WC, Cp]

    gp = jnp.pad(gamma.astype(jnp.float32).reshape(1, Cout), ((0, 0), (0, Cp - Cout)))
    bp = jnp.pad(beta.astype(jnp.float32).reshape(1, Cout), ((0, 0), (0, Cp - Cout)))

    cparams_par = pltpu.CompilerParams(
        dimension_semantics=("parallel",),        # batch blocks shard across v7x's two TCs
        vmem_limit_bytes=32 * 1024 * 1024,        # per-step working set is tens of KB
    )

    # ---- pass 1: pool + conv + per-tile BN partials (pipelined over batch blocks) ------------
    conv, stats = pl.pallas_call(
        pool_conv_stats_kernel,
        grid=(G,),
        in_specs=[
            pl.BlockSpec((4, MB, Kp), lambda i: (0, i, 0)),
            pl.BlockSpec((Kp, WC), lambda i: (0, 0)),
            pl.BlockSpec((WC, Cp), lambda i: (0, 0)),
        ],
        out_specs=(
            pl.BlockSpec((MB, WC), lambda i: (i, 0)),
            pl.BlockSpec((1, 2, Cp), lambda i: (i, 0, 0)),
        ),
        out_shape=(
            jax.ShapeDtypeStruct((Npad * Ho, WC), jnp.bfloat16),
            jax.ShapeDtypeStruct((G, 2, Cp), jnp.float32),
        ),
        compiler_params=cparams_par,
    )(xt, wb, sel)

    # ---- pass 2: global BN stat combine + scale/shift fold + lane expansion (done ONCE) ------
    m_total = float(N * Ho * Wo)                  # real element count (excludes batch padding)

    def bn_scale_shift_kernel(stats_ref, gamma_ref, beta_ref, scale_ref, shift_ref):
        st = stats_ref[...]                                              # [G, 2, Cp]
        s_tot = jnp.sum(st[:, 0, :], axis=0, keepdims=True)              # [1, Cp]
        ss_tot = jnp.sum(st[:, 1, :], axis=0, keepdims=True)             # [1, Cp]
        mean = s_tot * (1.0 / m_total)
        var = ss_tot * (1.0 / m_total) - mean * mean   # biased variance (training forward)
        scale = gamma_ref[...] * lax.rsqrt(var + EPS)                    # [1, Cp]
        shift = beta_ref[...] - mean * scale                             # [1, Cp]
        scale_ref[...] = jnp.tile(scale, (1, Wo))                        # [1, WC]
        shift_ref[...] = jnp.tile(shift, (1, Wo))

    scale_l, shift_l = pl.pallas_call(
        bn_scale_shift_kernel,
        grid=(1,),
        in_specs=[
            pl.BlockSpec((G, 2, Cp), lambda i: (0, 0, 0)),
            pl.BlockSpec((1, Cp), lambda i: (0, 0)),
            pl.BlockSpec((1, Cp), lambda i: (0, 0)),
        ],
        out_specs=(
            pl.BlockSpec((1, WC), lambda i: (0, 0)),
            pl.BlockSpec((1, WC), lambda i: (0, 0)),
        ),
        out_shape=(
            jax.ShapeDtypeStruct((1, WC), jnp.float32),
            jax.ShapeDtypeStruct((1, WC), jnp.float32),
        ),
        compiler_params=pltpu.CompilerParams(
            dimension_semantics=("arbitrary",),
            vmem_limit_bytes=32 * 1024 * 1024,
        ),
    )(stats, gp, bp)

    # ---- pass 3: FMA + ReLU (memory-bound; scale/shift precomputed, lane-dense I/O) ----------
    out = pl.pallas_call(
        bn_relu_kernel,
        grid=(G,),
        in_specs=[
            pl.BlockSpec((MB, WC), lambda i: (i, 0)),
            pl.BlockSpec((1, WC), lambda i: (0, 0)),
            pl.BlockSpec((1, WC), lambda i: (0, 0)),
        ],
        out_specs=pl.BlockSpec((MB, WC), lambda i: (i, 0)),
        out_shape=jax.ShapeDtypeStruct((Npad * Ho, WC), jnp.float32),
        compiler_params=cparams_par,
    )(conv, scale_l, shift_l)

    # lane layout is (w, co)-minor -> NHWC; drop batch / channel padding, back to NCHW.
    out = out.reshape(Npad, Ho, Wo, Cp)[:N, :, :, :Cout]
    return jnp.transpose(out, (0, 3, 1, 2))


def reference(x_nchw, w_oihw, gamma, beta):
    """Pure-JAX reference with PyTorch semantics, mirroring the kernel's MXU-native precision
    model: bf16 conv operands + f32 accumulation, BN stats in f32 from the f32 conv, and the
    bf16 conv slab feeding the normalize/affine/ReLU (all BN math in f32)."""
    N, Cin, H, W = x_nchw.shape
    Ho, Wo = -(-H // 2), -(-W // 2)
    xp = jnp.pad(x_nchw, ((0, 0), (0, 0), (0, 2 * Ho - H), (0, 2 * Wo - W)),
                 constant_values=-jnp.inf)
    pooled = lax.reduce_window(xp, -jnp.inf, lax.max, (1, 1, 2, 2), (1, 1, 2, 2), "VALID")
    conv = lax.conv_general_dilated(
        pooled.astype(jnp.bfloat16), w_oihw.astype(jnp.bfloat16), (1, 1),
        ((PAD, PAD), (PAD, PAD)), dimension_numbers=("NCHW", "OIHW", "NCHW"),
        preferred_element_type=jnp.float32)
    mean = jnp.mean(conv, axis=(0, 2, 3), keepdims=True)
    var = jnp.mean(conv * conv, axis=(0, 2, 3), keepdims=True) - mean * mean
    conv_q = conv.astype(jnp.bfloat16).astype(jnp.float32)     # bf16 conv slab (as in kernel)
    y = (conv_q - mean) * lax.rsqrt(var + EPS) * gamma.reshape(1, -1, 1, 1) \
        + beta.reshape(1, -1, 1, 1)
    return jnp.maximum(y, 0.0)


if __name__ == "__main__":
    key = jax.random.PRNGKey(0)
    kx, kw, kg, kb = jax.random.split(key, 4)

    N, Cin, Cout, H, W = 2, 4, 8, 16, 16
    x = jax.random.normal(kx, (N, Cin, H, W), jnp.float32)
    w = jax.random.normal(kw, (Cout, Cin, KS, KS), jnp.float32) * 0.2   # Conv2d weight, bias=False
    gamma = 1.0 + 0.1 * jax.random.normal(kg, (Cout,), jnp.float32)     # BN affine weight
    beta = 0.1 * jax.random.normal(kb, (Cout,), jnp.float32)            # BN affine bias

    out = jax.block_until_ready(down_conv_bn_relu(x, w, gamma, beta))

    ref = reference(x, w, gamma, beta)
    assert out.shape == ref.shape == (N, Cout, H // 2, W // 2)
    max_err = float(jnp.max(jnp.abs(out - ref)))
    assert jnp.allclose(out, ref, atol=2e-3, rtol=2e-3), max_err
    print("KERNEL_OK")
</pallas_src>

<mosaic_0001>
module attributes {stable_mosaic.version = 11 : i64} {
  func.func @pool_conv_stats_kernel(%arg0: i32, %arg1: memref<4x16x128xbf16, #tpu.memory_space<vmem>>, %arg2: memref<128x128xbf16, #tpu.memory_space<vmem>>, %arg3: memref<128x16xf32, #tpu.memory_space<vmem>>, %arg4: memref<16x128xbf16, #tpu.memory_space<vmem>>, %arg5: memref<1x2x16xf32, #tpu.memory_space<vmem>>) attributes {dimension_semantics = [#tpu.dimension_semantics<parallel>], iteration_bounds = array<i64: 1>, scalar_prefetch = 0 : i64, scratch_operands = 0 : i64, tpu.core_type = #tpu.core_type<tc>, window_params = [{transform_indices = @transform_0, window_bounds = array<i64: 4, 16, 128>}, {pipeline_mode = #tpu.pipeline_mode<synchronous>, transform_indices = @transform_1, window_bounds = array<i64: 128, 128>}, {pipeline_mode = #tpu.pipeline_mode<synchronous>, transform_indices = @transform_2, window_bounds = array<i64: 128, 16>}, {transform_indices = @transform_3, window_bounds = array<i64: 16, 128>}, {transform_indices = @transform_4, window_bounds = array<i64: 1, 2, 16>}]} {
    %c0 = arith.constant 0 : index
    %c0_0 = arith.constant 0 : index
    %c0_1 = arith.constant 0 : index
    %0 = vector.load %arg1[%c0, %c0_0, %c0_1] : memref<4x16x128xbf16, #tpu.memory_space<vmem>>, vector<1x16x128xbf16>
    %1 = vector.shape_cast %0 : vector<1x16x128xbf16> to vector<16x128xbf16>
    %c1 = arith.constant 1 : index
    %c0_2 = arith.constant 0 : index
    %c0_3 = arith.constant 0 : index
    %2 = vector.load %arg1[%c1, %c0_2, %c0_3] : memref<4x16x128xbf16, #tpu.memory_space<vmem>>, vector<1x16x128xbf16>
    %3 = vector.shape_cast %2 : vector<1x16x128xbf16> to vector<16x128xbf16>
    %4 = arith.maximumf %1, %3 : vector<16x128xbf16>
    %c2 = arith.constant 2 : index
    %c0_4 = arith.constant 0 : index
    %c0_5 = arith.constant 0 : index
    %5 = vector.load %arg1[%c2, %c0_4, %c0_5] : memref<4x16x128xbf16, #tpu.memory_space<vmem>>, vector<1x16x128xbf16>
    %6 = vector.shape_cast %5 : vector<1x16x128xbf16> to vector<16x128xbf16>
    %c3 = arith.constant 3 : index
    %c0_6 = arith.constant 0 : index
    %c0_7 = arith.constant 0 : index
    %7 = vector.load %arg1[%c3, %c0_6, %c0_7] : memref<4x16x128xbf16, #tpu.memory_space<vmem>>, vector<1x16x128xbf16>
    %8 = vector.shape_cast %7 : vector<1x16x128xbf16> to vector<16x128xbf16>
    %9 = arith.maximumf %6, %8 : vector<16x128xbf16>
    %10 = arith.maximumf %4, %9 : vector<16x128xbf16>
    %c0_8 = arith.constant 0 : index
    %c0_9 = arith.constant 0 : index
    %11 = vector.load %arg2[%c0_8, %c0_9] : memref<128x128xbf16, #tpu.memory_space<vmem>>, vector<128x128xbf16>
    %cst = arith.constant dense<0.000000e+00> : vector<16x128xf32>
    %12 = tpu.matmul %10, %11, %cst {dimension_numbers = #tpu.dot_dimension_numbers<[1], [0], [0], [1], [0, 0, 1, 1], [], []>} : vector<16x128xbf16>, vector<128x128xbf16>, vector<16x128xf32> -> vector<16x128xf32>
    %13 = arith.truncf %12 : vector<16x128xf32> to vector<16x128xbf16>
    %c0_10 = arith.constant 0 : index
    %c0_11 = arith.constant 0 : index
    %14 = vector.load %arg4[%c0_10, %c0_11] : memref<16x128xbf16, #tpu.memory_space<vmem>>, vector<16x128xbf16>
    tpu.vector_store %arg4[%c0_10, %c0_11], %13 {strides = array<i32>} : memref<16x128xbf16, #tpu.memory_space<vmem>>, vector<16x128xbf16>,
    %c0_12 = arith.constant 0 : index
    %c0_13 = arith.constant 0 : index
    %15 = vector.load %arg3[%c0_12, %c0_13] : memref<128x16xf32, #tpu.memory_space<vmem>>, vector<128x16xf32>
    %cst_14 = arith.constant dense<0.000000e+00> : vector<16x16xf32>
    %16 = tpu.matmul %12, %15, %cst_14 {dimension_numbers = #tpu.dot_dimension_numbers<[1], [0], [0], [1], [0, 0, 1, 1], [], []>} : vector<16x128xf32>, vector<128x16xf32>, vector<16x16xf32> -> vector<16x16xf32>
    %17 = arith.mulf %12, %12 : vector<16x128xf32>
    %c0_15 = arith.constant 0 : index
    %c0_16 = arith.constant 0 : index
    %18 = vector.load %arg3[%c0_15, %c0_16] : memref<128x16xf32, #tpu.memory_space<vmem>>, vector<128x16xf32>
    %cst_17 = arith.constant dense<0.000000e+00> : vector<16x16xf32>
    %19 = tpu.matmul %17, %18, %cst_17 {dimension_numbers = #tpu.dot_dimension_numbers<[1], [0], [0], [1], [0, 0, 1, 1], [], []>} : vector<16x128xf32>, vector<128x16xf32>, vector<16x16xf32> -> vector<16x16xf32>
    %cst_18 = arith.constant dense<0.000000e+00> : vector<16xf32>
    %20 = vector.multi_reduction <add>, %16, %cst_18 [0] : vector<16x16xf32> to vector<16xf32>
    %21 = vector.shape_cast %20 : vector<16xf32> to vector<1x16xf32>
    %c0_19 = arith.constant 0 : index
    %c0_20 = arith.constant 0 : index
    %c0_21 = arith.constant 0 : index
    %22 = vector.load %arg5[%c0_19, %c0_20, %c0_21] : memref<1x2x16xf32, #tpu.memory_space<vmem>>, vector<1x1x16xf32>
    %23 = vector.shape_cast %22 : vector<1x1x16xf32> to vector<1x16xf32>
    %24 = vector.shape_cast %21 : vector<1x16xf32> to vector<1x1x16xf32>
    tpu.vector_store %arg5[%c0_19, %c0_20, %c0_21], %24 {strides = array<i32>} : memref<1x2x16xf32, #tpu.memory_space<vmem>>, vector<1x1x16xf32>,
    %cst_22 = arith.constant dense<0.000000e+00> : vector<16xf32>
    %25 = vector.multi_reduction <add>, %19, %cst_22 [0] : vector<16x16xf32> to vector<16xf32>
    %26 = vector.shape_cast %25 : vector<16xf32> to vector<1x16xf32>
    %c0_23 = arith.constant 0 : index
    %c1_24 = arith.constant 1 : index
    %c0_25 = arith.constant 0 : index
    %27 = vector.load %arg5[%c0_23, %c1_24, %c0_25] : memref<1x2x16xf32, #tpu.memory_space<vmem>>, vector<1x1x16xf32>
    %28 = vector.shape_cast %27 : vector<1x1x16xf32> to vector<1x16xf32>
    %29 = vector.shape_cast %26 : vector<1x16xf32> to vector<1x1x16xf32>
    tpu.vector_store %arg5[%c0_23, %c1_24, %c0_25], %29 {strides = array<i32>} : memref<1x2x16xf32, #tpu.memory_space<vmem>>, vector<1x1x16xf32>,
    return
  }
  func.func @transform_0(%arg0: i32) -> (i32, i32, i32) {
    %c0_i32 = arith.constant 0 : i32
    %c0_i32_0 = arith.constant 0 : i32
    %c0_i32_1 = arith.constant 0 : i32
    return %c0_i32, %arg0, %c0_i32_0 : i32, i32, i32
  }
  func.func @transform_1(%arg0: i32) -> (i32, i32) {
    %c0_i32 = arith.constant 0 : i32
    %c0_i32_0 = arith.constant 0 : i32
    %c0_i32_1 = arith.constant 0 : i32
    return %c0_i32, %c0_i32_0 : i32, i32
  }
  func.func @transform_2(%arg0: i32) -> (i32, i32) {
    %c0_i32 = arith.constant 0 : i32
    %c0_i32_0 = arith.constant 0 : i32
    %c0_i32_1 = arith.constant 0 : i32
    return %c0_i32, %c0_i32_0 : i32, i32
  }
  func.func @transform_3(%arg0: i32) -> (i32, i32) {
    %c0_i32 = arith.constant 0 : i32
    %c0_i32_0 = arith.constant 0 : i32
    return %arg0, %c0_i32 : i32, i32
  }
  func.func @transform_4(%arg0: i32) -> (i32, i32, i32) {
    %c0_i32 = arith.constant 0 : i32
    %c0_i32_0 = arith.constant 0 : i32
    %c0_i32_1 = arith.constant 0 : i32
    return %arg0, %c0_i32, %c0_i32_0 : i32, i32, i32
  }
}

</mosaic_0001>

<llo_original>
// kernel: tpu_custom_call.1
$region0: #{tpu_custom_call.1}
  #allocation0 [shape = 'u32[]', space=smem, size = 0x4, offset = 0x4, fixed_abs, tag = 'smem constant byte address 0x4 - core index']
  #allocation1 [shape = 'u32[144,128]{1,0:T(1,128)}', space=vmem, size = 0x12000, scoped, tag = 'internal scratch']
  %s0 = inlined_call_operand.vmem [shape: bf16[4,16,128], index: 0, kind: input, shape index: {}]
  %s1 = inlined_call_operand.vmem [shape: bf16[128,128], index: 1, kind: input, shape index: {}]
  %s2 = inlined_call_operand.vmem [shape: f32[128,16], index: 2, kind: input, shape index: {}]
  %s3 = inlined_call_operand.hbm [shape: bf16[16,128], index: 3, kind: output, shape index: {0}]
  %s4 = inlined_call_operand.hbm [shape: f32[1,2,16], index: 4, kind: output, shape index: {1}]
  %5 = xla_tuple %s3, %s4
  %s6 = sld [smem:[#allocation0]]
  $region30: #{tpu_custom_call.1} parent=0
    _
  %s8 = ssub.s32 1, %s6
  %s9 = scalar_select 0, %s8, %s6
  $region1: #{tpu_custom_call.1} parent=0
    #allocation2 [shape = 'u8[4096]{0}', space=vmem, size = 0x1000, scoped, tag = 'output window, operand 0, single buffered']
    #allocation3 [shape = 's32[1]{0}', space=sflag, size = 0x4, scoped, tag = 'scoped memory for tpu_custom_call.1']
    #allocation4 [shape = 'u8[1024]{0}', space=vmem, size = 0x400, scoped, tag = 'output window, operand 1, single buffered']
    #allocation5 [shape = 's32[1]{0}', space=sflag, size = 0x4, scoped, tag = 'scoped memory for tpu_custom_call.1']
    %10 = vsyncpa [#allocation3], 0
    %11 = vsyncpa [#allocation5], 0
    // Predicated region
    $region2: #{tpu_custom_call.1} parent=1 // pred_check
      _
    $region3: #{tpu_custom_call.1} parent=1 // pred_check_branch
      %13 = sbr.rel (0) target = $region5
    $region4: #{tpu_custom_call.1} parent=1 // pred_region
      _
    $region5: #{tpu_custom_call.1} parent=1 // pred_fallthru
      _
    // Predicated region
    $region6: #{tpu_custom_call.1} parent=1 // pred_check
      _
    $region7: #{tpu_custom_call.1} parent=1 // pred_check_branch
      %15 = sbr.rel (0) target = $region9
    $region8: #{tpu_custom_call.1} parent=1 // pred_region
      _
    $region9: #{tpu_custom_call.1} parent=1 // pred_fallthru
      _
    // Predicated region
    $region10: #{tpu_custom_call.1} parent=1 // pred_check
      _
    $region11: #{tpu_custom_call.1} parent=1 // pred_check_branch
      %17 = sbr.rel (0) target = $region13
    $region12: #{tpu_custom_call.1} parent=1 // pred_region
      _
    $region13: #{tpu_custom_call.1} parent=1 // pred_fallthru
      _
    %v19 = vld [vmem:[%s0] sm:$0xf]
    %v20 = vld [vmem:[%s0 + $0x4] sm:$0xf]
    %s21 = scalar_lea.vmem %s0, 8
    %v22 = vld [vmem:[%s21] sm:$0xf]
    %v23 = vld [vmem:[%s21 + $0x4] sm:$0xf]
    %v24 = vmax.bf16 %v19, %v22
    %v25 = vmax.bf16 %v20, %v23
    %s26 = scalar_lea.vmem %s0, 16
    %v27 = vld [vmem:[%s26] sm:$0xf]
    %v28 = vld [vmem:[%s26 + $0x4] sm:$0xf]
    %s29 = scalar_lea.vmem %s0, 24
    %v30 = vld [vmem:[%s29] sm:$0xf]
    %v31 = vld [vmem:[%s29 + $0x4] sm:$0xf]
    %v32 = vmax.bf16 %v27, %v30
    %v33 = vmax.bf16 %v28, %v31
    %v34 = vmax.bf16 %v24, %v32
    %v35 = vmax.bf16 %v25, %v33
    %v36 = vld [vmem:[%s1] sm:$0xf]
    %v37 = vld [vmem:[%s1 + $0x4] sm:$0xf]
    %v38 = vld [vmem:[%s1 + $0x8] sm:$0xf]
    %v39 = vld [vmem:[%s1 + $0xc] sm:$0xf]
    %v40 = vld [vmem:[%s1 + $0x10] sm:$0xf]
    %v41 = vld [vmem:[%s1 + $0x14] sm:$0xf]
    %v42 = vld [vmem:[%s1 + $0x18] sm:$0xf]
    %v43 = vld [vmem:[%s1 + $0x1c] sm:$0xf]
    %v44 = vld [vmem:[%s1 + $0x20] sm:$0xf]
    %v45 = vld [vmem:[%s1 + $0x24] sm:$0xf]
    %v46 = vld [vmem:[%s1 + $0x28] sm:$0xf]
    %v47 = vld [vmem:[%s1 + $0x2c] sm:$0xf]
    %v48 = vld [vmem:[%s1 + $0x30] sm:$0xf]
    %v49 = vld [vmem:[%s1 + $0x34] sm:$0xf]
    %v50 = vld [vmem:[%s1 + $0x38] sm:$0xf]
    %v51 = vld [vmem:[%s1 + $0x3c] sm:$0xf]
    %v54 = vunpack.c.l.b16 %v34
    %v55 = vunpack.c.l.b16 %v35
    %v56 = vpack.c.b16 %v55, %v54
    %v74 = vunpack.c.l.b16 %v36
    %v75 = vunpack.c.l.b16 %v37
    %v76 = vunpack.c.l.b16 %v38
    %v77 = vunpack.c.l.b16 %v39
    %v78 = vunpack.c.l.b16 %v40
    %v79 = vunpack.c.l.b16 %v41
    %v80 = vunpack.c.l.b16 %v42
    %v81 = vunpack.c.l.b16 %v43
    %v82 = vunpack.c.l.b16 %v44
    %v83 = vunpack.c.l.b16 %v45
    %v84 = vunpack.c.l.b16 %v46
    %v85 = vunpack.c.l.b16 %v47
    %v86 = vunpack.c.l.b16 %v48
    %v87 = vunpack.c.l.b16 %v49
    %v88 = vunpack.c.l.b16 %v50
    %v89 = vunpack.c.l.b16 %v51
    %v90 = vpack.c.b16 %v75, %v74
    %v91 = vpack.c.b16 %v77, %v76
    %v92 = vpack.c.b16 %v79, %v78
    %v93 = vpack.c.b16 %v81, %v80
    %v94 = vpack.c.b16 %v83, %v82
    %v95 = vpack.c.b16 %v85, %v84
    %v96 = vpack.c.b16 %v87, %v86
    %v97 = vpack.c.b16 %v89, %v88
    %106 = vmatprep.subr.bf16.mxu0 0
    %107 = vmatpush1.bf16.msra.mxu0 %v97
    %108 = vmatprep.subr.bf16.mxu0 0
    %109 = vmatpush1.bf16.msra.mxu0 %v96
    %110 = vmatprep.subr.bf16.mxu0 0
    %111 = vmatpush1.bf16.msra.mxu0 %v95
    %112 = vmatprep.subr.bf16.mxu0 0
    %113 = vmatpush1.bf16.msra.mxu0 %v94
    %114 = vmatprep.subr.bf16.mxu0 0
    %115 = vmatpush1.bf16.msra.mxu0 %v93
    %116 = vmatprep.subr.bf16.mxu0 0
    %117 = vmatpush1.bf16.msra.mxu0 %v92
    %118 = vmatprep.subr.bf16.mxu0 0
    %119 = vmatpush1.bf16.msra.mxu0 %v91
    %120 = vmatprep.subr.bf16.mxu0 0
    %121 = vmatpush1.bf16.msra.mxu0 %v90
    %122 = vmatprep.subr.bf16.mxu0 0
    %123 = vmatpush2.bf16.msra.mxu0 0
    %124 = vmatprep.subr.bf16.mxu0 0
    %125 = vmatpush2.bf16.msra.mxu0 0
    %126 = vmatprep.subr.bf16.mxu0 0
    %127 = vmatpush2.bf16.msra.mxu0 0
    %128 = vmatprep.subr.bf16.mxu0 0
    %129 = vmatpush2.bf16.msra.mxu0 0
    %130 = vmatprep.subr.bf16.mxu0 0
    %131 = vmatpush2.bf16.msra.mxu0 0
    %132 = vmatprep.subr.bf16.mxu0 0
    %133 = vmatpush2.bf16.msra.mxu0 0
    %134 = vmatprep.subr.bf16.mxu0 0
    %135 = vmatpush2.bf16.msra.mxu0 0
    %136 = vmatprep.subr.bf16.mxu0 0
    %137 = vmatpush2.bf16.msra.mxu0 0
    %138 = vmatprep.mubr.bf16.mxu0 0
    %139 = vmatmul.mubr.bf16.gmra.mxu0 %v56
    %v140 = vpop.f32.mrf.mxu0
    %v141 = vadd.f32 0.0, %v140
    %v142 = vpop.f32.mrf.mxu0
    %v143 = vpop.f32.mrf.mxu0
    %v144 = vadd.f32 0.0, %v143
    %v145 = vpop.f32.mrf.mxu0
    %146 = vdwg.mxu0
    %v147 = vpack.c.bf16 %v144, %v141
    %v149 = vunpack.c.l.b16 %v147
    %v150 = vunpack.c.h.b16 %v147
    %v151 = vpack.c.b16 %v149, %v149
    %v152 = vpack.c.b16 %v150, %v150
    %155 = vst [vmem:[#allocation2] sm:$0xf] %v151
    %156 = vst [vmem:[#allocation2 + $0x4] sm:$0xf] %v152
    %v157 = vld [vmem:[%s2] sm:$0xff]
    %v158 = vld [vmem:[%s2 + $0x8] sm:$0xff]
    %v159 = vld [vmem:[%s2 + $0x10] sm:$0xff]
    %v160 = vld [vmem:[%s2 + $0x18] sm:$0xff]
    %v161 = vld [vmem:[%s2 + $0x20] sm:$0xff]
    %v162 = vld [vmem:[%s2 + $0x28] sm:$0xff]
    %v163 = vld [vmem:[%s2 + $0x30] sm:$0xff]
    %v164 = vld [vmem:[%s2 + $0x38] sm:$0xff]
    %v165 = vld [vmem:[%s2 + $0x40] sm:$0xff]
    %v166 = vld [vmem:[%s2 + $0x48] sm:$0xff]
    %v167 = vld [vmem:[%s2 + $0x50] sm:$0xff]
    %v168 = vld [vmem:[%s2 + $0x58] sm:$0xff]
    %v169 = vld [vmem:[%s2 + $0x60] sm:$0xff]
    %v170 = vld [vmem:[%s2 + $0x68] sm:$0xff]
    %v171 = vld [vmem:[%s2 + $0x70] sm:$0xff]
    %v172 = vld [vmem:[%s2 + $0x78] sm:$0xff]
    %173 = vmatprep.subr.mxu0 0.0
    %174 = vmatpush1.msra.mxu0 %v172
    %175 = vmatprep.subr.mxu0 0.0
    %176 = vmatpush1.msra.mxu0 %v171
    %177 = vmatprep.subr.mxu0 0.0
    %178 = vmatpush1.msra.mxu0 %v170
    %179 = vmatprep.subr.mxu0 0.0
    %180 = vmatpush1.msra.mxu0 %v169
    %181 = vmatprep.subr.mxu0 0.0
    %182 = vmatpush1.msra.mxu0 %v168
    %183 = vmatprep.subr.mxu0 0.0
    %184 = vmatpush1.msra.mxu0 %v167
    %185 = vmatprep.subr.mxu0 0.0
    %186 = vmatpush1.msra.mxu0 %v166
    %187 = vmatprep.subr.mxu0 0.0
    %188 = vmatpush1.msra.mxu0 %v165
    %189 = vmatprep.subr.mxu0 0.0
    %190 = vmatpush1.msra.mxu0 %v164
    %191 = vmatprep.subr.mxu0 0.0
    %192 = vmatpush1.msra.mxu0 %v163
    %193 = vmatprep.subr.mxu0 0.0
    %194 = vmatpush1.msra.mxu0 %v162
    %195 = vmatprep.subr.mxu0 0.0
    %196 = vmatpush1.msra.mxu0 %v161
    %197 = vmatprep.subr.mxu0 0.0
    %198 = vmatpush1.msra.mxu0 %v160
    %199 = vmatprep.subr.mxu0 0.0
    %200 = vmatpush1.msra.mxu0 %v159
    %201 = vmatprep.subr.mxu0 0.0
    %202 = vmatpush1.msra.mxu0 %v158
    %203 = vmatprep.subr.mxu0 0.0
    %204 = vmatpush1.msra.mxu0 %v157
    %205 = vmatprep.subr.mxu0 0.0
    %206 = vmatpush2.msra.mxu0 0.0
    %207 = vmatprep.subr.mxu0 0.0
    %208 = vmatpush2.msra.mxu0 0.0
    %209 = vmatprep.subr.mxu0 0.0
    %210 = vmatpush2.msra.mxu0 0.0
    %211 = vmatprep.subr.mxu0 0.0
    %212 = vmatpush2.msra.mxu0 0.0
    %213 = vmatprep.subr.mxu0 0.0
    %214 = vmatpush2.msra.mxu0 0.0
    %215 = vmatprep.subr.mxu0 0.0
    %216 = vmatpush2.msra.mxu0 0.0
    %217 = vmatprep.subr.mxu0 0.0
    %218 = vmatpush2.msra.mxu0 0.0
    %219 = vmatprep.subr.mxu0 0.0
    %220 = vmatpush2.msra.mxu0 0.0
    %221 = vmatprep.subr.mxu0 0.0
    %222 = vmatpush2.msra.mxu0 0.0
    %223 = vmatprep.subr.mxu0 0.0
    %224 = vmatpush2.msra.mxu0 0.0
    %225 = vmatprep.subr.mxu0 0.0
    %226 = vmatpush2.msra.mxu0 0.0
    %227 = vmatprep.subr.mxu0 0.0
    %228 = vmatpush2.msra.mxu0 0.0
    %229 = vmatprep.subr.mxu0 0.0
    %230 = vmatpush2.msra.mxu0 0.0
    %231 = vmatprep.subr.mxu0 0.0
    %232 = vmatpush2.msra.mxu0 0.0
    %233 = vmatprep.subr.mxu0 0.0
    %234 = vmatpush2.msra.mxu0 0.0
    %235 = vmatprep.subr.mxu0 0.0
    %236 = vmatpush2.msra.mxu0 0.0
    %237 = vmatprep.mubr.f32.mxu0 0.0
    %238 = vmatmul.mubr.f32.gmra.mxu0 %v141
    %v239 = vpop.f32.mrf.mxu0
    %v240 = vadd.f32 0.0, %v239
    %v241 = vpop.f32.mrf.mxu0
    %242 = vmatprep.mubr.f32.mxu0 0.0
    %243 = vmatmul.mubr.f32.gmra.mxu0 %v144
    %v244 = vpop.f32.mrf.mxu0
    %v245 = vadd.f32 0.0, %v244
    %v246 = vpop.f32.mrf.mxu0
    %247 = vdwg.mxu0
    %v248 = vmul.f32 %v141, %v141
    %v249 = vmul.f32 %v144, %v144
    %250 = vmatprep.subr.mxu0 0.0
    %251 = vmatpush1.msra.mxu0 %v172
    %252 = vmatprep.subr.mxu0 0.0
    %253 = vmatpush1.msra.mxu0 %v171
    %254 = vmatprep.subr.mxu0 0.0
    %255 = vmatpush1.msra.mxu0 %v170
    %256 = vmatprep.subr.mxu0 0.0
    %257 = vmatpush1.msra.mxu0 %v169
    %258 = vmatprep.subr.mxu0 0.0
    %259 = vmatpush1.msra.mxu0 %v168
    %260 = vmatprep.subr.mxu0 0.0
    %261 = vmatpush1.msra.mxu0 %v167
    %262 = vmatprep.subr.mxu0 0.0
    %263 = vmatpush1.msra.mxu0 %v166
    %264 = vmatprep.subr.mxu0 0.0
    %265 = vmatpush1.msra.mxu0 %v165
    %266 = vmatprep.subr.mxu0 0.0
    %267 = vmatpush1.msra.mxu0 %v164
    %268 = vmatprep.subr.mxu0 0.0
    %269 = vmatpush1.msra.mxu0 %v163
    %270 = vmatprep.subr.mxu0 0.0
    %271 = vmatpush1.msra.mxu0 %v162
    %272 = vmatprep.subr.mxu0 0.0
    %273 = vmatpush1.msra.mxu0 %v161
    %274 = vmatprep.subr.mxu0 0.0
    %275 = vmatpush1.msra.mxu0 %v160
    %276 = vmatprep.subr.mxu0 0.0
    %277 = vmatpush1.msra.mxu0 %v159
    %278 = vmatprep.subr.mxu0 0.0
    %279 = vmatpush1.msra.mxu0 %v158
    %280 = vmatprep.subr.mxu0 0.0
    %281 = vmatpush1.msra.mxu0 %v157
    %282 = vmatprep.subr.mxu0 0.0
    %283 = vmatpush2.msra.mxu0 0.0
    %284 = vmatprep.subr.mxu0 0.0
    %285 = vmatpush2.msra.mxu0 0.0
    %286 = vmatprep.subr.mxu0 0.0
    %287 = vmatpush2.msra.mxu0 0.0
    %288 = vmatprep.subr.mxu0 0.0
    %289 = vmatpush2.msra.mxu0 0.0
    %290 = vmatprep.subr.mxu0 0.0
    %291 = vmatpush2.msra.mxu0 0.0
    %292 = vmatprep.subr.mxu0 0.0
    %293 = vmatpush2.msra.mxu0 0.0
    %294 = vmatprep.subr.mxu0 0.0
    %295 = vmatpush2.msra.mxu0 0.0
    %296 = vmatprep.subr.mxu0 0.0
    %297 = vmatpush2.msra.mxu0 0.0
    %298 = vmatprep.subr.mxu0 0.0
    %299 = vmatpush2.msra.mxu0 0.0
    %300 = vmatprep.subr.mxu0 0.0
    %301 = vmatpush2.msra.mxu0 0.0
    %302 = vmatprep.subr.mxu0 0.0
    %303 = vmatpush2.msra.mxu0 0.0
    %304 = vmatprep.subr.mxu0 0.0
    %305 = vmatpush2.msra.mxu0 0.0
    %306 = vmatprep.subr.mxu0 0.0
    %307 = vmatpush2.msra.mxu0 0.0
    %308 = vmatprep.subr.mxu0 0.0
    %309 = vmatpush2.msra.mxu0 0.0
    %310 = vmatprep.subr.mxu0 0.0
    %311 = vmatpush2.msra.mxu0 0.0
    %312 = vmatprep.subr.mxu0 0.0
    %313 = vmatpush2.msra.mxu0 0.0
    %314 = vmatprep.mubr.f32.mxu0 0.0
    %315 = vmatmul.mubr.f32.gmra.mxu0 %v248
    %v316 = vpop.f32.mrf.mxu0
    %v317 = vadd.f32 0.0, %v316
    %v318 = vpop.f32.mrf.mxu0
    %319 = vmatprep.mubr.f32.mxu0 0.0
    %320 = vmatmul.mubr.f32.gmra.mxu0 %v249
    %v321 = vpop.f32.mrf.mxu0
    %v322 = vadd.f32 0.0, %v321
    %v323 = vpop.f32.mrf.mxu0
    %324 = vdwg.mxu0
    %vm325 = vcmask 130048
    %v326 = vsel %vm325, %v240, 0.0
    %v327 = vsel %vm325, %v245, 0.0
    %v328 = vadd.f32 %v326, %v327
    %v329 = vrot.slane %v328, 4
    %v330 = vadd.f32 %v328, %v329
    %v331 = vrot.slane %v330, 2
    %v332 = vadd.f32 %v330, %v331
    %v333 = vrot.slane %v332, 1
    %v334 = vadd.f32 %v332, %v333
    %vm335 = vcmask 122880
    %336 = vst.msk [vmem:[#allocation4] sm:$0x1] %vm335, %v334
    %v337 = vsel %vm325, %v317, 0.0
    %v338 = vsel %vm325, %v322, 0.0
    %v339 = vadd.f32 %v337, %v338
    %v340 = vrot.slane %v339, 4
    %v341 = vadd.f32 %v339, %v340
    %v342 = vrot.slane %v341, 2
    %v343 = vadd.f32 %v341, %v342
    %v344 = vrot.slane %v343, 1
    %v345 = vadd.f32 %v343, %v344
    %346 = vst.msk [vmem:[#allocation4 + $0x1] sm:$0x1] %vm335, %v345
    // Predicated region
    $region14: #{tpu_custom_call.1} parent=1 // pred_check
      _
    $region15: #{tpu_custom_call.1} parent=1 // pred_check_branch
      %348 = sbr.rel (0) target = $region17
    $region16: #{tpu_custom_call.1} parent=1 // pred_region
      %s350 = ssub.s32 128, 128
      %351 = vsyncadd [#allocation3], %s350
      %s352 = sshll.u32 [#allocation2], 4
      %s353 = int_to_ptr.vmem [resolvable:$true] %s352
      %358 = dma.vmem_to_hbm [thread:$0]  %s353, 128, %s3, [#allocation3], 64, 64, 4
    $region17: #{tpu_custom_call.1} parent=1 // pred_fallthru
      _
    // Predicated region
    $region18: #{tpu_custom_call.1} parent=1 // pred_check
      _
    $region19: #{tpu_custom_call.1} parent=1 // pred_check_branch
      %360 = sbr.rel (0) target = $region21
    $region20: #{tpu_custom_call.1} parent=1 // pred_region
      %s362 = ssub.s32 32, 32
      %363 = vsyncadd [#allocation5], %s362
      %s365 = sshll.u32 [#allocation4], 4
      %s366 = int_to_ptr.vmem [resolvable:$true] %s365
      %368 = dma.vmem_to_hbm [thread:$0]  %s366, 32, %s4, [#allocation5]
    $region21: #{tpu_custom_call.1} parent=1 // pred_fallthru
      _
    // Predicated region
    $region22: #{tpu_custom_call.1} parent=1 // pred_check
      _
    $region23: #{tpu_custom_call.1} parent=1 // pred_check_branch
      %370 = sbr.rel (0) target = $region25
    $region24: #{tpu_custom_call.1} parent=1 // pred_region
      %371 = dma.done [#allocation3], 128
    $region25: #{tpu_custom_call.1} parent=1 // pred_fallthru
      _
    // Predicated region
    $region26: #{tpu_custom_call.1} parent=1 // pred_check
      _
    $region27: #{tpu_custom_call.1} parent=1 // pred_check_branch
      %373 = sbr.rel (0) target = $region29
    $region28: #{tpu_custom_call.1} parent=1 // pred_region
      %374 = dma.done [#allocation5], 32
    $region29: #{tpu_custom_call.1} parent=1 // pred_fallthru
      _
    %375 = vsyncpa [#allocation3], 1
    %376 = vsyncpa [#allocation5], 1

</llo_original>
